<compile_context>
chip_gen: v6e
topology: v6e:2x2x1
jax: 0.10.0
libtpu: 0.0.40
codegen_flags: <defaults>
</compile_context>

<pallas_src>
import functools

import jax
import jax.numpy as jnp
from jax.experimental import pallas as pl
from jax.experimental.pallas import tpu as pltpu


def _round_up(x, m):
    return ((x + m - 1) // m) * m


def _pad_dim(d):
    # Lane-dense feature width; prefer multiples of 256 (v6e/v7x MXU is
    # 2x256x256) once past a single 128-lane vreg.
    return 128 if d <= 128 else _round_up(d, 256)


def _vmem_limit_bytes(needed):
    """Generation-aware VMEM limit derived from the actual buffer footprint."""
    try:
        cap = int(pltpu.get_tpu_info().vmem_capacity_bytes)
    except Exception:
        cap = 64 * 1024 * 1024  # conservative fallback: v7x physical VMEM
    want = int(needed * 1.3) + (8 << 20)  # headroom for compiler scratch
    want = max(want, 32 << 20)
    return min(want, int(cap * 0.85))


def _mlp_fused_kernel(x_ref, wfc_ref, bfc_ref, wh_ref, bh_ref, whd_ref, bhd_ref,
                      o_ref, act_ref, *, compute_dtype):
    """One (batch_tile, layer) grid step.

      l == 0             : act = x @ W_fc + b_fc                 (no activation)
      0 < l < n_layers-1 : act = relu(act @ W_hid[l-1] + b_hid)  (hidden stack)
      l == n_layers-1    : out = act @ W_head + b_head           (narrow store)
    """
    l = pl.program_id(1)
    n_layers = pl.num_programs(1)

    @pl.when(l == 0)
    def _():
        y = jnp.dot(x_ref[...].astype(compute_dtype), wfc_ref[...],
                    preferred_element_type=jnp.float32)
        act_ref[...] = y + bfc_ref[...]                     # f32 carry, no ReLU

    @pl.when(jnp.logical_and(l > 0, l < n_layers - 1))
    def _():
        a = act_ref[...].astype(compute_dtype)              # [TB, D] bf16
        y = jnp.dot(a, wh_ref[0], preferred_element_type=jnp.float32)
        act_ref[...] = jnp.maximum(y + bh_ref[0], 0.0)      # ReLU in f32

    @pl.when(l == n_layers - 1)
    def _():
        a = act_ref[...].astype(compute_dtype)
        y = jnp.dot(a, whd_ref[...], preferred_element_type=jnp.float32)
        o_ref[...] = (y + bhd_ref[...]).astype(o_ref.dtype)  # only store, no act write


def prepare_mlp_params(params, compute_dtype=jnp.bfloat16):
    """Pad / stack / cast the weights once (hoisted out of the per-call path).

    params: list of (w [fan_in, fan_out], b [1, fan_out]); layer 0 is fc,
    last is h_out, middle layers are the hidden Linear+ReLU stack.
    """
    n_layers = len(params)
    assert n_layers >= 2, "need at least fc and h_out"
    h_in = params[0][0].shape[0]
    h = params[0][0].shape[1]
    h_out = params[-1][0].shape[1]
    D_in, D, D_out = _pad_dim(h_in), _pad_dim(h), _pad_dim(h_out)

    (w_fc, b_fc), (w_hd, b_hd) = params[0], params[-1]
    hidden = params[1:-1]
    n_hidden = len(hidden)

    w_fc_p = jnp.pad(w_fc, ((0, D_in - h_in), (0, D - h))).astype(compute_dtype)
    b_fc_p = jnp.pad(b_fc.reshape(1, -1), ((0, 0), (0, D - h))).astype(jnp.float32)
    w_hd_p = jnp.pad(w_hd, ((0, D - h), (0, D_out - h_out))).astype(compute_dtype)
    b_hd_p = jnp.pad(b_hd.reshape(1, -1), ((0, 0), (0, D_out - h_out))).astype(jnp.float32)

    if n_hidden:
        w_hid = jnp.stack(
            [jnp.pad(w, ((0, D - h), (0, D - h))) for w, _ in hidden]
        ).astype(compute_dtype)                                    # [L, D, D]
        b_hid = jnp.stack(
            [jnp.pad(b.reshape(1, -1), ((0, 0), (0, D - h))) for _, b in hidden]
        ).astype(jnp.float32)                                      # [L, 1, D]
    else:
        # Degenerate layer_number == 0: dummy block, never read by the kernel.
        w_hid = jnp.zeros((1, D, D), compute_dtype)
        b_hid = jnp.zeros((1, 1, D), jnp.float32)

    dims = dict(h_in=h_in, h=h, h_out=h_out, D_in=D_in, D=D, D_out=D_out,
                n_layers=n_layers, L_hid=max(n_hidden, 1))
    return (w_fc_p, b_fc_p, w_hid, b_hid, w_hd_p, b_hd_p), dims


def mlp_forward(prepared, x, *, block_b=512, compute_dtype=jnp.bfloat16):
    """Fused MLP forward. prepared = prepare_mlp_params(...); x: [B, h_in]."""
    (w_fc, b_fc, w_hid, b_hid, w_hd, b_hd), dims = prepared
    B = x.shape[0]
    D_in, D, D_out = dims["D_in"], dims["D"], dims["D_out"]
    n_layers, L_hid = dims["n_layers"], dims["L_hid"]
    out_dtype = x.dtype

    # Batch tile: multiple of 8 sublanes, default up to 512 rows so each
    # weight stream is amortized over enough FLOPs to be MXU-bound on v6e/v7x.
    TB = _round_up(min(block_b, _round_up(B, 8)), 8)
    B_pad = _round_up(B, TB)

    x_pad = jnp.pad(x, ((0, B_pad - B), (0, D_in - dims["h_in"]))).astype(compute_dtype)

    # Hidden weight block for layer l lives at stack index l-1 (clamped so the
    # first / last grid steps reuse an adjacent block -> no redundant DMA).
    def hid_idx(i, l):
        return (jnp.minimum(jnp.maximum(l - 1, 0), L_hid - 1), 0, 0)

    grid = (B_pad // TB, n_layers)

    cd = jnp.dtype(compute_dtype).itemsize
    od = jnp.dtype(out_dtype).itemsize
    need = (2 * TB * D_in * cd            # x tiles (double-buffered)
            + 2 * D_in * D * cd           # fc weight
            + 2 * D * D * cd              # hidden weight block
            + 2 * D * D_out * cd          # head weight
            + 2 * (2 * D + D_out) * 4     # biases
            + 2 * TB * D_out * od         # output tiles
            + TB * D * 4)                 # resident f32 activation scratch

    out = pl.pallas_call(
        functools.partial(_mlp_fused_kernel, compute_dtype=compute_dtype),
        out_shape=jax.ShapeDtypeStruct((B_pad, D_out), out_dtype),
        grid_spec=pltpu.PrefetchScalarGridSpec(
            num_scalar_prefetch=0,
            grid=grid,
            in_specs=[
                pl.BlockSpec((TB, D_in), lambda i, l: (i, 0)),    # x tile
                pl.BlockSpec((D_in, D), lambda i, l: (0, 0)),     # fc weight (resident)
                pl.BlockSpec((1, D), lambda i, l: (0, 0)),        # fc bias
                pl.BlockSpec((1, D, D), hid_idx),                 # hidden weight (streamed)
                pl.BlockSpec((1, 1, D), hid_idx),                 # hidden bias
                pl.BlockSpec((D, D_out), lambda i, l: (0, 0)),    # head weight (resident)
                pl.BlockSpec((1, D_out), lambda i, l: (0, 0)),    # head bias
            ],
            out_specs=pl.BlockSpec((TB, D_out), lambda i, l: (i, 0)),
            scratch_shapes=[pltpu.VMEM((TB, D), jnp.float32)],    # resident activation
        ),
        compiler_params=pltpu.CompilerParams(
            dimension_semantics=("parallel", "arbitrary"),
            vmem_limit_bytes=_vmem_limit_bytes(need),
        ),
    )(x_pad, w_fc, b_fc, w_hid, b_hid, w_hd, b_hd)

    return out[:B, :dims["h_out"]]


def init_mlp_params(key, layer_number, h_in, h, h_out, dtype=jnp.float32):
    """Deterministic init mirroring nn.Linear's U(-1/sqrt(fan_in), 1/sqrt(fan_in)).

    Weights stored as [fan_in, fan_out] (PyTorch weight.T), bias as [1, fan_out].
    """
    params = []
    dims = [(h_in, h)] + [(h, h)] * layer_number + [(h, h_out)]
    for (fi, fo) in dims:
        key, kw, kb = jax.random.split(key, 3)
        bound = 1.0 / jnp.sqrt(jnp.asarray(fi, dtype))
        w = jax.random.uniform(kw, (fi, fo), dtype, -bound, bound)
        b = jax.random.uniform(kb, (1, fo), dtype, -bound, bound)
        params.append((w, b))
    return params


def mlp_reference(params, x, compute_dtype=jnp.bfloat16):
    """Pure-JAX reference with the same bf16-matmul / f32-accumulate arithmetic."""
    n = len(params)
    y = x
    for i, (w, b) in enumerate(params):
        z = jnp.dot(
            y.astype(compute_dtype),
            w.astype(compute_dtype),
            preferred_element_type=jnp.float32,
        ) + b.reshape(1, -1).astype(jnp.float32)
        if 0 < i < n - 1:
            z = jnp.maximum(z, 0.0)
        y = z
    return y.astype(x.dtype)


if __name__ == "__main__":
    layer_number = 2
    h_in, h, h_out = 32, 64, 16
    batch = 8

    key = jax.random.PRNGKey(0)
    key, kx = jax.random.split(key)
    x = jax.random.normal(kx, (batch, h_in), jnp.float32)

    params = init_mlp_params(key, layer_number, h_in, h, h_out)

    prepared = prepare_mlp_params(params)          # hoisted: pad/stack/cast once
    out = mlp_forward(prepared, x)
    out = jax.block_until_ready(out)

    ref = mlp_reference(params, x)
    assert out.shape == (batch, h_out)
    err = float(jnp.max(jnp.abs(out - ref)))
    assert jnp.allclose(out, ref, atol=1e-3, rtol=1e-3), f"max abs err {err}"

    print("KERNEL_OK")
</pallas_src>

<mosaic_0001>
module attributes {stable_mosaic.version = 11 : i64} {
  func.func @_mlp_fused_kernel(%arg0: i32, %arg1: i32, %arg2: memref<8x128xbf16, #tpu.memory_space<vmem>>, %arg3: memref<128x128xbf16, #tpu.memory_space<vmem>>, %arg4: memref<1x128xf32, #tpu.memory_space<vmem>>, %arg5: memref<1x128x128xbf16, #tpu.memory_space<vmem>>, %arg6: memref<1x1x128xf32, #tpu.memory_space<vmem>>, %arg7: memref<128x128xbf16, #tpu.memory_space<vmem>>, %arg8: memref<1x128xf32, #tpu.memory_space<vmem>>, %arg9: memref<8x128xf32, #tpu.memory_space<vmem>>, %arg10: memref<8x128xf32, #tpu.memory_space<vmem>>) attributes {dimension_semantics = [#tpu.dimension_semantics<parallel>, #tpu.dimension_semantics<arbitrary>], iteration_bounds = array<i64: 1, 4>, scalar_prefetch = 0 : i64, scratch_operands = 1 : i64, tpu.core_type = #tpu.core_type<tc>, window_params = [{transform_indices = @transform_0, window_bounds = array<i64: 8, 128>}, {pipeline_mode = #tpu.pipeline_mode<synchronous>, transform_indices = @transform_1, window_bounds = array<i64: 128, 128>}, {pipeline_mode = #tpu.pipeline_mode<synchronous>, transform_indices = @transform_2, window_bounds = array<i64: 1, 128>}, {transform_indices = @transform_3, window_bounds = array<i64: 1, 128, 128>}, {transform_indices = @transform_4, window_bounds = array<i64: 1, 1, 128>}, {pipeline_mode = #tpu.pipeline_mode<synchronous>, transform_indices = @transform_5, window_bounds = array<i64: 128, 128>}, {pipeline_mode = #tpu.pipeline_mode<synchronous>, transform_indices = @transform_6, window_bounds = array<i64: 1, 128>}, {transform_indices = @transform_7, window_bounds = array<i64: 8, 128>}]} {
    %c0_i32 = arith.constant 0 : i32
    %0 = arith.cmpi eq, %arg1, %c0_i32 : i32
    %1 = arith.extui %0 : i1 to i32
    %c0_i32_0 = arith.constant 0 : i32
    %2 = arith.cmpi ne, %1, %c0_i32_0 : i32
    scf.if %2 {
      %c0 = arith.constant 0 : index
      %c0_5 = arith.constant 0 : index
      %11 = vector.load %arg2[%c0, %c0_5] : memref<8x128xbf16, #tpu.memory_space<vmem>>, vector<8x128xbf16>
      %c0_6 = arith.constant 0 : index
      %c0_7 = arith.constant 0 : index
      %12 = vector.load %arg3[%c0_6, %c0_7] : memref<128x128xbf16, #tpu.memory_space<vmem>>, vector<128x128xbf16>
      %cst = arith.constant dense<0.000000e+00> : vector<8x128xf32>
      %13 = tpu.matmul %11, %12, %cst {dimension_numbers = #tpu.dot_dimension_numbers<[1], [0], [0], [1], [0, 0, 1, 1], [], []>} : vector<8x128xbf16>, vector<128x128xbf16>, vector<8x128xf32> -> vector<8x128xf32>
      %c0_8 = arith.constant 0 : index
      %c0_9 = arith.constant 0 : index
      %14 = vector.load %arg4[%c0_8, %c0_9] : memref<1x128xf32, #tpu.memory_space<vmem>>, vector<1x128xf32>
      %15 = vector.broadcast %14 : vector<1x128xf32> to vector<8x128xf32>
      %16 = arith.addf %13, %15 : vector<8x128xf32>
      %c0_10 = arith.constant 0 : index
      %c0_11 = arith.constant 0 : index
      %17 = vector.load %arg10[%c0_10, %c0_11] : memref<8x128xf32, #tpu.memory_space<vmem>>, vector<8x128xf32>
      tpu.vector_store %arg10[%c0_10, %c0_11], %16 {strides = array<i32>} : memref<8x128xf32, #tpu.memory_space<vmem>>, vector<8x128xf32>,
    } else {
    }
    %c0_i32_1 = arith.constant 0 : i32
    %3 = arith.cmpi sgt, %arg1, %c0_i32_1 : i32
    %c3_i32 = arith.constant 3 : i32
    %4 = arith.cmpi slt, %arg1, %c3_i32 : i32
    %5 = arith.andi %3, %4 : i1
    %6 = arith.extui %5 : i1 to i32
    %c0_i32_2 = arith.constant 0 : i32
    %7 = arith.cmpi ne, %6, %c0_i32_2 : i32
    scf.if %7 {
      %c0 = arith.constant 0 : index
      %c0_5 = arith.constant 0 : index
      %11 = vector.load %arg10[%c0, %c0_5] : memref<8x128xf32, #tpu.memory_space<vmem>>, vector<8x128xf32>
      %12 = arith.truncf %11 : vector<8x128xf32> to vector<8x128xbf16>
      %c0_6 = arith.constant 0 : index
      %c0_7 = arith.constant 0 : index
      %c0_8 = arith.constant 0 : index
      %13 = vector.load %arg5[%c0_6, %c0_7, %c0_8] : memref<1x128x128xbf16, #tpu.memory_space<vmem>>, vector<1x128x128xbf16>
      %14 = vector.shape_cast %13 : vector<1x128x128xbf16> to vector<128x128xbf16>
      %cst = arith.constant dense<0.000000e+00> : vector<8x128xf32>
      %15 = tpu.matmul %12, %14, %cst {dimension_numbers = #tpu.dot_dimension_numbers<[1], [0], [0], [1], [0, 0, 1, 1], [], []>} : vector<8x128xbf16>, vector<128x128xbf16>, vector<8x128xf32> -> vector<8x128xf32>
      %c0_9 = arith.constant 0 : index
      %c0_10 = arith.constant 0 : index
      %c0_11 = arith.constant 0 : index
      %16 = vector.load %arg6[%c0_9, %c0_10, %c0_11] : memref<1x1x128xf32, #tpu.memory_space<vmem>>, vector<1x1x128xf32>
      %17 = vector.shape_cast %16 : vector<1x1x128xf32> to vector<1x128xf32>
      %18 = vector.broadcast %17 : vector<1x128xf32> to vector<8x128xf32>
      %19 = arith.addf %15, %18 : vector<8x128xf32>
      %cst_12 = arith.constant 0.000000e+00 : f32
      %20 = vector.broadcast %cst_12 : f32 to vector<8x128xf32>
      %21 = arith.maximumf %19, %20 : vector<8x128xf32>
      %c0_13 = arith.constant 0 : index
      %c0_14 = arith.constant 0 : index
      %22 = vector.load %arg10[%c0_13, %c0_14] : memref<8x128xf32, #tpu.memory_space<vmem>>, vector<8x128xf32>
      tpu.vector_store %arg10[%c0_13, %c0_14], %21 {strides = array<i32>} : memref<8x128xf32, #tpu.memory_space<vmem>>, vector<8x128xf32>,
    } else {
    }
    %c3_i32_3 = arith.constant 3 : i32
    %8 = arith.cmpi eq, %arg1, %c3_i32_3 : i32
    %9 = arith.extui %8 : i1 to i32
    %c0_i32_4 = arith.constant 0 : i32
    %10 = arith.cmpi ne, %9, %c0_i32_4 : i32
    scf.if %10 {
      %c0 = arith.constant 0 : index
      %c0_5 = arith.constant 0 : index
      %11 = vector.load %arg10[%c0, %c0_5] : memref<8x128xf32, #tpu.memory_space<vmem>>, vector<8x128xf32>
      %12 = arith.truncf %11 : vector<8x128xf32> to vector<8x128xbf16>
      %c0_6 = arith.constant 0 : index
      %c0_7 = arith.constant 0 : index
      %13 = vector.load %arg7[%c0_6, %c0_7] : memref<128x128xbf16, #tpu.memory_space<vmem>>, vector<128x128xbf16>
      %cst = arith.constant dense<0.000000e+00> : vector<8x128xf32>
      %14 = tpu.matmul %12, %13, %cst {dimension_numbers = #tpu.dot_dimension_numbers<[1], [0], [0], [1], [0, 0, 1, 1], [], []>} : vector<8x128xbf16>, vector<128x128xbf16>, vector<8x128xf32> -> vector<8x128xf32>
      %c0_8 = arith.constant 0 : index
      %c0_9 = arith.constant 0 : index
      %15 = vector.load %arg8[%c0_8, %c0_9] : memref<1x128xf32, #tpu.memory_space<vmem>>, vector<1x128xf32>
      %16 = vector.broadcast %15 : vector<1x128xf32> to vector<8x128xf32>
      %17 = arith.addf %14, %16 : vector<8x128xf32>
      %c0_10 = arith.constant 0 : index
      %c0_11 = arith.constant 0 : index
      %18 = vector.load %arg9[%c0_10, %c0_11] : memref<8x128xf32, #tpu.memory_space<vmem>>, vector<8x128xf32>
      tpu.vector_store %arg9[%c0_10, %c0_11], %17 {strides = array<i32>} : memref<8x128xf32, #tpu.memory_space<vmem>>, vector<8x128xf32>,
    } else {
    }
    return
  }
  func.func @transform_0(%arg0: i32, %arg1: i32) -> (i32, i32) {
    %c0_i32 = arith.constant 0 : i32
    %c0_i32_0 = arith.constant 0 : i32
    return %arg0, %c0_i32 : i32, i32
  }
  func.func @transform_1(%arg0: i32, %arg1: i32) -> (i32, i32) {
    %c0_i32 = arith.constant 0 : i32
    %c0_i32_0 = arith.constant 0 : i32
    %c0_i32_1 = arith.constant 0 : i32
    return %c0_i32, %c0_i32_0 : i32, i32
  }
  func.func @transform_2(%arg0: i32, %arg1: i32) -> (i32, i32) {
    %c0_i32 = arith.constant 0 : i32
    %c0_i32_0 = arith.constant 0 : i32
    %c0_i32_1 = arith.constant 0 : i32
    return %c0_i32, %c0_i32_0 : i32, i32
  }
  func.func @transform_3(%arg0: i32, %arg1: i32) -> (i32, i32, i32) {
    %c1_i32 = arith.constant 1 : i32
    %0 = arith.subi %arg1, %c1_i32 : i32
    %c0_i32 = arith.constant 0 : i32
    %1 = arith.maxsi %0, %c0_i32 : i32
    %c1_i32_0 = arith.constant 1 : i32
    %2 = arith.minsi %1, %c1_i32_0 : i32
    %c0_i32_1 = arith.constant 0 : i32
    %c0_i32_2 = arith.constant 0 : i32
    %c0_i32_3 = arith.constant 0 : i32
    return %2, %c0_i32_1, %c0_i32_2 : i32, i32, i32
  }
  func.func @transform_4(%arg0: i32, %arg1: i32) -> (i32, i32, i32) {
    %c1_i32 = arith.constant 1 : i32
    %0 = arith.subi %arg1, %c1_i32 : i32
    %c0_i32 = arith.constant 0 : i32
    %1 = arith.maxsi %0, %c0_i32 : i32
    %c1_i32_0 = arith.constant 1 : i32
    %2 = arith.minsi %1, %c1_i32_0 : i32
    %c0_i32_1 = arith.constant 0 : i32
    %c0_i32_2 = arith.constant 0 : i32
    %c0_i32_3 = arith.constant 0 : i32
    return %2, %c0_i32_1, %c0_i32_2 : i32, i32, i32
  }
  func.func @transform_5(%arg0: i32, %arg1: i32) -> (i32, i32) {
    %c0_i32 = arith.constant 0 : i32
    %c0_i32_0 = arith.constant 0 : i32
    %c0_i32_1 = arith.constant 0 : i32
    return %c0_i32, %c0_i32_0 : i32, i32
  }
  func.func @transform_6(%arg0: i32, %arg1: i32) -> (i32, i32) {
    %c0_i32 = arith.constant 0 : i32
    %c0_i32_0 = arith.constant 0 : i32
    %c0_i32_1 = arith.constant 0 : i32
    return %c0_i32, %c0_i32_0 : i32, i32
  }
  func.func @transform_7(%arg0: i32, %arg1: i32) -> (i32, i32) {
    %c0_i32 = arith.constant 0 : i32
    %c0_i32_0 = arith.constant 0 : i32
    return %arg0, %c0_i32 : i32, i32
  }
}

</mosaic_0001>

<llo_original>
// kernel: tpu_custom_call.1
$region0: #{tpu_custom_call.1}
  #allocation0 [shape = 'u32[]', space=smem, size = 0x4, offset = 0x4, fixed_abs, tag = 'smem constant byte address 0x4 - core index']
  #allocation1 [shape = 'u32[144,128]{1,0:T(1,128)}', space=vmem, size = 0x12000, scoped, tag = 'internal scratch']
  #allocation2 [shape = 'f32[8,128]{1,0:T(8,128)}', space=vmem, size = 0x1000, scoped, tag = 'scratch operand']
  %s0 = inlined_call_operand.hbm [shape: bf16[8,128], index: 0, kind: input, shape index: {}]
  %s1 = inlined_call_operand.hbm [shape: bf16[128,128], index: 1, kind: input, shape index: {}]
  %s2 = inlined_call_operand.vmem [shape: f32[1,128], index: 2, kind: input, shape index: {}]
  %s3 = inlined_call_operand.hbm [shape: bf16[2,128,128], index: 3, kind: input, shape index: {}]
  %s4 = inlined_call_operand.vmem [shape: f32[2,1,128], index: 4, kind: input, shape index: {}]
  %s5 = inlined_call_operand.hbm [shape: bf16[128,128], index: 5, kind: input, shape index: {}]
  %s6 = inlined_call_operand.vmem [shape: f32[1,128], index: 6, kind: input, shape index: {}]
  %s7 = inlined_call_operand.hbm [shape: f32[8,128], index: 7, kind: output, shape index: {}]
  %s8 = sld [smem:[#allocation0]]
  $region89: #{tpu_custom_call.1} parent=0
    _
  %s10 = ssub.s32 1, %s8
  %s11 = scalar_select 0, %s10, %s8
  $region1: #{tpu_custom_call.1} parent=0
    #allocation3 [shape = 'u8[2048]{0}', space=vmem, size = 0x800, scoped, tag = 'input window, operand 0, single buffered']
    #allocation4 [shape = 's32[2]{0}', space=sflag, size = 0x8, scoped, tag = 'scoped memory for tpu_custom_call.1']
    #allocation5 [shape = 's32[2]{0}', space=sflag, size = 0x8, scoped, tag = 'scoped memory for tpu_custom_call.1']
    #allocation6 [shape = 'u8[32768]{0}', space=vmem, size = 0x8000, scoped, tag = 'input window, operand 1, single buffered']
    #allocation7 [shape = 's32[1]{0}', space=sflag, size = 0x4, scoped, tag = 'scoped memory for tpu_custom_call.1']
    #allocation8 [shape = 'u8[65536]{0}', space=vmem, size = 0x10000, scoped, tag = 'input window, operand 3']
    #allocation9 [shape = 'u8[32768]{0}', space=vmem, size = 0x8000, scoped, tag = 'input window, operand 5, single buffered']
    #allocation10 [shape = 'u8[4096]{0}', space=vmem, size = 0x1000, scoped, tag = 'output window, operand 0, single buffered']
    %12 = vsyncpa [#allocation4], 0
    %13 = vsyncpa [#allocation7], 0
    %14 = vsyncpa [#allocation5], 0
    loop: start=0, step=1, limit=6
    $region2: #{tpu_custom_call.1} parent=1 // loop_pre_header
      _
    $region3: #{tpu_custom_call.1} parent=1 // loop_header
      %s16 = sphi 0, %s20
      %p17 = scmp.ge.s32.totalorder %s16, 6
      %s23 = sphi 0, %s35
      %s24 = sphi 0, %s31
      %s25 = sphi 0, %s23
      %s26 = sphi 0, %s24
      %s27 = sphi 0, %s25
      %s28 = sphi 0, %s26
      %s38 = sphi 0, %s40
      %s41 = sphi 0, %s38
      %s42 = sphi 0, %s41
      %s58 = sphi 0, %s42
      %s62 = sphi 0, %s62
      %s64 = sphi 0, %s62
      %s65 = sphi 0, %s64
      %s79 = sphi 0, %s65
      %s83 = sphi 0, %s83
      %s85 = sphi 0, %s83
      %s86 = sphi 0, %s85
      %s100 = sphi 0, %s86
      %s116 = sphi 0, %s118
      %s119 = sphi 0, %s116
      %s120 = sphi 0, %s119
      %s136 = sphi 0, %s120
      %s152 = sphi 0, %s154
      %s155 = sphi 0, %s152
      %s156 = sphi 0, %s155
      %s172 = sphi 0, %s156
      %s176 = sphi 0, %s176
      %s178 = sphi 0, %s176
      %s179 = sphi 0, %s178
      %s193 = sphi 0, %s179
      %s197 = sphi 0, %s197
      %s199 = sphi 0, %s197
      %s200 = sphi 0, %s199
      %s214 = sphi 0, %s200
      %s220 = sphi 0, %s222
      %s223 = sphi 0, %s220
      %s224 = sphi 0, %s223
      %s240 = sphi 0, %s224
    $region4: #{tpu_custom_call.1} parent=1 // loop_header_branch
      %19 = sbr.rel (%p17) target = $region8
    $region5: #{tpu_custom_call.1} parent=1 // loop_body
      %s21 = ssub.s32 %s16, 1
      %s22 = ssub.s32 %s16, 2
      %s29 = sadd.s32 1, %s24
      %p30 = scmp.ge.s32.totalorder %s29, 4
      %s31 = scalar_select %p30, 0, %s29
      %s32 = sadd.s32 1, %s23
      %s33 = scalar_select %p30, %s32, %s23
      %p34 = scmp.ge.s32.totalorder %s33, 1
      %s35 = scalar_select %p34, 0, %s33
      %s36 = ssub.s32 %s23, %s35
      %p37 = scmp.eq.s32.totalorder %s36, 0
      %s39 = sadd.s32 %s38, 1
      %s40 = scalar_select %p37, %s38, %s39
      %p43 = pneg %p37
      %p44 = scmp.eq.s32.totalorder %s16, 3
      %p45 = por %p43, %p44
      %p46 = scmp.ne.s32.totalorder %s38, %s41
      %p47 = scmp.eq.s32.totalorder %s16, 0
      %p48 = por %p46, %p47
      %p49 = scmp.ne.s32.totalorder %s38, %s41
      %p50 = scmp.eq.s32.totalorder %s21, 3
      %p51 = por %p49, %p50
      %p52 = scmp.ne.s32.totalorder %s41, %s42
      %p53 = scmp.eq.s32.totalorder %s21, 0
      %p54 = por %p52, %p53
      %p55 = scmp.ne.s32.totalorder %s41, %s42
      %p56 = scmp.eq.s32.totalorder %s22, 3
      %p57 = por %p55, %p56
      %p59 = scmp.ne.s32.totalorder %s42, %s58
      %p60 = scmp.eq.s32.totalorder %s22, 0
      %p61 = por %p59, %p60
      %s63 = sadd.s32 %s62, 1
      %p66 = scmp.eq.s32.totalorder %s16, 3
      %p67 = scmp.ne.s32.totalorder %s62, %s64
      %p68 = scmp.eq.s32.totalorder %s16, 0
      %p69 = por %p67, %p68
      %p70 = scmp.ne.s32.totalorder %s62, %s64
      %p71 = scmp.eq.s32.totalorder %s21, 3
      %p72 = por %p70, %p71
      %p73 = scmp.ne.s32.totalorder %s64, %s65
      %p74 = scmp.eq.s32.totalorder %s21, 0
      %p75 = por %p73, %p74
      %p76 = scmp.ne.s32.totalorder %s64, %s65
      %p77 = scmp.eq.s32.totalorder %s22, 3
      %p78 = por %p76, %p77
      %p80 = scmp.ne.s32.totalorder %s65, %s79
      %p81 = scmp.eq.s32.totalorder %s22, 0
      %p82 = por %p80, %p81
      %s84 = sadd.s32 %s83, 1
      %p87 = scmp.eq.s32.totalorder %s16, 3
      %p88 = scmp.ne.s32.totalorder %s83, %s85
      %p89 = scmp.eq.s32.totalorder %s16, 0
      %p90 = por %p88, %p89
      %p91 = scmp.ne.s32.totalorder %s83, %s85
      %p92 = scmp.eq.s32.totalorder %s21, 3
      %p93 = por %p91, %p92
      %p94 = scmp.ne.s32.totalorder %s85, %s86
      %p95 = scmp.eq.s32.totalorder %s21, 0
      %p96 = por %p94, %p95
      %p97 = scmp.ne.s32.totalorder %s85, %s86
      %p98 = scmp.eq.s32.totalorder %s22, 3
      %p99 = por %p97, %p98
      %p101 = scmp.ne.s32.totalorder %s86, %s100
      %p102 = scmp.eq.s32.totalorder %s22, 0
      %p103 = por %p101, %p102
      %s104 = ssub.s32 %s24, 1
      %p105 = scmp.gt.s32.totalorder %s104, 0
      %s106 = scalar_select %p105, %s104, 0
      %p107 = scmp.lt.s32.totalorder %s106, 1
      %s108 = scalar_select %p107, %s106, 1
      %s109 = ssub.s32 %s31, 1
      %p110 = scmp.gt.s32.totalorder %s109, 0
      %s111 = scalar_select %p110, %s109, 0
      %p112 = scmp.lt.s32.totalorder %s111, 1
      %s113 = scalar_select %p112, %s111, 1
      %s114 = ssub.s32 %s108, %s113
      %p115 = scmp.eq.s32.totalorder %s114, 0
      %s117 = sadd.s32 %s116, 1
      %s118 = scalar_select %p115, %s116, %s117
      %p121 = pneg %p115
      %p122 = scmp.eq.s32.totalorder %s16, 3
      %p123 = por %p121, %p122
      %p124 = scmp.ne.s32.totalorder %s116, %s119
      %p125 = scmp.eq.s32.totalorder %s16, 0
      %p126 = por %p124, %p125
      %p127 = scmp.ne.s32.totalorder %s116, %s119
      %p128 = scmp.eq.s32.totalorder %s21, 3
      %p129 = por %p127, %p128
      %p130 = scmp.ne.s32.totalorder %s119, %s120
      %p131 = scmp.eq.s32.totalorder %s21, 0
      %p132 = por %p130, %p131
      %p133 = scmp.ne.s32.totalorder %s119, %s120
      %p134 = scmp.eq.s32.totalorder %s22, 3
      %p135 = por %p133, %p134
      %p137 = scmp.ne.s32.totalorder %s120, %s136
      %p138 = scmp.eq.s32.totalorder %s22, 0
      %p139 = por %p137, %p138
      %s140 = ssub.s32 %s24, 1
      %p141 = scmp.gt.s32.totalorder %s140, 0
      %s142 = scalar_select %p141, %s140, 0
      %p143 = scmp.lt.s32.totalorder %s142, 1
      %s144 = scalar_select %p143, %s142, 1
      %s145 = ssub.s32 %s31, 1
      %p146 = scmp.gt.s32.totalorder %s145, 0
      %s147 = scalar_select %p146, %s145, 0
      %p148 = scmp.lt.s32.totalorder %s147, 1
      %s149 = scalar_select %p148, %s147, 1
      %s150 = ssub.s32 %s144, %s149
      %p151 = scmp.eq.s32.totalorder %s150, 0
      %s153 = sadd.s32 %s152, 1
      %s154 = scalar_select %p151, %s152, %s153
      %p157 = pneg %p151
      %p158 = scmp.eq.s32.totalorder %s16, 3
      %p159 = por %p157, %p158
      %p160 = scmp.ne.s32.totalorder %s152, %s155
      %p161 = scmp.eq.s32.totalorder %s16, 0
      %p162 = por %p160, %p161
      %p163 = scmp.ne.s32.totalorder %s152, %s155
      %p164 = scmp.eq.s32.totalorder %s21, 3
      %p165 = por %p163, %p164
      %p166 = scmp.ne.s32.totalorder %s155, %s156
      %p167 = scmp.eq.s32.totalorder %s21, 0
      %p168 = por %p166, %p167
      %p169 = scmp.ne.s32.totalorder %s155, %s156
      %p170 = scmp.eq.s32.totalorder %s22, 3
      %p171 = por %p169, %p170
      %p173 = scmp.ne.s32.totalorder %s156, %s172
      %p174 = scmp.eq.s32.totalorder %s22, 0
      %p175 = por %p173, %p174
      %s177 = sadd.s32 %s176, 1
      %p180 = scmp.eq.s32.totalorder %s16, 3
      %p181 = scmp.ne.s32.totalorder %s176, %s178
      %p182 = scmp.eq.s32.totalorder %s16, 0
      %p183 = por %p181, %p182
      %p184 = scmp.ne.s32.totalorder %s176, %s178
      %p185 = scmp.eq.s32.totalorder %s21, 3
      %p186 = por %p184, %p185
      %p187 = scmp.ne.s32.totalorder %s178, %s179
      %p188 = scmp.eq.s32.totalorder %s21, 0
      %p189 = por %p187, %p188
      %p190 = scmp.ne.s32.totalorder %s178, %s179
      %p191 = scmp.eq.s32.totalorder %s22, 3
      %p192 = por %p190, %p191
      %p194 = scmp.ne.s32.totalorder %s179, %s193
      %p195 = scmp.eq.s32.totalorder %s22, 0
      %p196 = por %p194, %p195
      %s198 = sadd.s32 %s197, 1
      %p201 = scmp.eq.s32.totalorder %s16, 3
      %p202 = scmp.ne.s32.totalorder %s197, %s199
      %p203 = scmp.eq.s32.totalorder %s16, 0
      %p204 = por %p202, %p203
      %p205 = scmp.ne.s32.totalorder %s197, %s199
      %p206 = scmp.eq.s32.totalorder %s21, 3
      %p207 = por %p205, %p206
      %p208 = scmp.ne.s32.totalorder %s199, %s200
      %p209 = scmp.eq.s32.totalorder %s21, 0
      %p210 = por %p208, %p209
      %p211 = scmp.ne.s32.totalorder %s199, %s200
      %p212 = scmp.eq.s32.totalorder %s22, 3
      %p213 = por %p211, %p212
      %p215 = scmp.ne.s32.totalorder %s200, %s214
      %p216 = scmp.eq.s32.totalorder %s22, 0
      %p217 = por %p215, %p216
      %s218 = ssub.s32 %s23, %s35
      %p219 = scmp.eq.s32.totalorder %s218, 0
      %s221 = sadd.s32 %s220, 1
      %s222 = scalar_select %p219, %s220, %s221
      %p225 = pneg %p219
      %p226 = scmp.eq.s32.totalorder %s16, 3
      %p227 = por %p225, %p226
      %p228 = scmp.ne.s32.totalorder %s220, %s223
      %p229 = scmp.eq.s32.totalorder %s16, 0
      %p230 = por %p228, %p229
      %p231 = scmp.ne.s32.totalorder %s220, %s223
      %p232 = scmp.eq.s32.totalorder %s21, 3
      %p233 = por %p231, %p232
      %p234 = scmp.ne.s32.totalorder %s223, %s224
      %p235 = scmp.eq.s32.totalorder %s21, 0
      %p236 = por %p234, %p235
      %p237 = scmp.ne.s32.totalorder %s223, %s224
      %p238 = scmp.eq.s32.totalorder %s22, 3
      %p239 = por %p237, %p238
      %p241 = scmp.ne.s32.totalorder %s224, %s240
      %p242 = scmp.eq.s32.totalorder %s22, 0
      %p243 = por %p241, %p242
      %p244 = scmp.le.s32.totalorder 1, %s16
      %p245 = scmp.lt.s32.totalorder %s16, 5
      %p246 = pnand %p244, %p245
      %p247 = pneg %p246
      // Predicated region
      $region9: #{tpu_custom_call.1} parent=5 // pred_check
        _
      $region10: #{tpu_custom_call.1} parent=5 // pred_check_branch
        %249 = sbr.rel (%p246) target = $region12
      $region11: #{tpu_custom_call.1} parent=5 // pred_region
        %s250 = ssub.s32 %s16, 1
        // Predicated region
        $region13: #{tpu_custom_call.1} parent=11 // pred_check
          %p251 = pneg %p54
        $region14: #{tpu_custom_call.1} parent=11 // pred_check_branch
          %253 = sbr.rel (%p251) target = $region16
        $region15: #{tpu_custom_call.1} parent=11 // pred_region
          %s255 = ssub.s32 64, 64
          %256 = vsyncadd [#allocation4], %s255
          %s257 = smul.addr %s25, 64
          %s258 = scalar_lea.hbm %s0, %s257
          %s260 = sshll.u32 [#allocation3], 4
          %s261 = int_to_ptr.vmem [resolvable:$true] %s260
          %263 = dma.hbm_to_vmem [thread:$0]  %s258, 64, %s261, [#allocation4]
        $region16: #{tpu_custom_call.1} parent=11 // pred_fallthru
          _
        // Predicated region
        $region17: #{tpu_custom_call.1} parent=11 // pred_check
          %p264 = pneg %p75
        $region18: #{tpu_custom_call.1} parent=11 // pred_check_branch
          %266 = sbr.rel (%p264) target = $region20
        $region19: #{tpu_custom_call.1} parent=11 // pred_region
          %s268 = ssub.s32 1024, 1024
          %269 = vsyncadd [#allocation7], %s268
          %s270 = sshll.u32 [#allocation6], 4
          %s271 = int_to_ptr.vmem [resolvable:$true] %s270
          %276 = dma.hbm_to_vmem [thread:$0]  %s1, 1024, %s271, [#allocation7], 64, 64, 4
        $region20: #{tpu_custom_call.1} parent=11 // pred_fallthru
          _
        // Predicated region
        $region21: #{tpu_custom_call.1} parent=11 // pred_check
          %p277 = pneg %p96
        $region22: #{tpu_custom_call.1} parent=11 // pred_check_branch
          %279 = sbr.rel (%p277) target = $region24
        $region23: #{tpu_custom_call.1} parent=11 // pred_region
          _
        $region24: #{tpu_custom_call.1} parent=11 // pred_fallthru
          _
        // Predicated region
        $region25: #{tpu_custom_call.1} parent=11 // pred_check
          %p280 = pneg %p189
        $region26: #{tpu_custom_call.1} parent=11 // pred_check_branch
          %282 = sbr.rel (%p280) target = $region28
        $region27: #{tpu_custom_call.1} parent=11 // pred_region
          %s284 = ssub.s32 1024, 1024
          %285 = vsyncadd [#allocation7], %s284
          %s286 = sshll.u32 [#allocation9], 4
          %s287 = int_to_ptr.vmem [resolvable:$true] %s286
          %292 = dma.hbm_to_vmem [thread:$0]  %s5, 1024, %s287, [#allocation7], 64, 64, 4
        $region28: #{tpu_custom_call.1} parent=11 // pred_fallthru
          _
        // Predicated region
        $region29: #{tpu_custom_call.1} parent=11 // pred_check
          %p293 = pneg %p210
        $region30: #{tpu_custom_call.1} parent=11 // pred_check_branch
          %295 = sbr.rel (%p293) target = $region32
        $region31: #{tpu_custom_call.1} parent=11 // pred_region
          _
        $region32: #{tpu_custom_call.1} parent=11 // pred_fallthru
          _
      $region12: #{tpu_custom_call.1} parent=5 // pred_fallthru
        _
      %p296 = scmp.lt.s32.totalorder %s16, 4
      // Predicated region
      $region33: #{tpu_custom_call.1} parent=5 // pred_check
        %p297 = pneg %p296
      $region34: #{tpu_custom_call.1} parent=5 // pred_check_branch
        %299 = sbr.rel (%p297) target = $region36
      $region35: #{tpu_custom_call.1} parent=5 // pred_region
        // Predicated region
        $region37: #{tpu_custom_call.1} parent=35 // pred_check
          %p300 = pneg %p126
        $region38: #{tpu_custom_call.1} parent=35 // pred_check_branch
          %302 = sbr.rel (%p300) target = $region40
        $region39: #{tpu_custom_call.1} parent=35 // pred_region
          %s303 = sand.u32 %s16, 1
          %s304 = scalar_lea.sflag [#allocation4], %s303
          %s305 = sand.u32 %s116, 1
          %s306 = smul.addr %s305, 64
          %s307 = scalar_lea.vmem [#allocation8], %s306
          %s308 = ssub.s32 %s24, 1
          %p309 = scmp.gt.s32.totalorder %s308, 0
          %s310 = scalar_select %p309, %s308, 0
          %p311 = scmp.lt.s32.totalorder %s310, 1
          %s312 = scalar_select %p311, %s310, 1
          %s314 = ssub.s32 1024, 1024
          %315 = vsyncadd %s304, %s314
          %s316 = smul.addr %s312, 16
          %s317 = smul.addr %s316, 64
          %s318 = scalar_lea.hbm %s3, %s317
          %s319 = sshll.u32 %s307, 4
          %s320 = int_to_ptr.vmem [resolvable:$true] %s319
          %325 = dma.hbm_to_vmem [thread:$0]  %s318, 1024, %s320, %s304, 64, 64, 4
        $region40: #{tpu_custom_call.1} parent=35 // pred_fallthru
          _
        // Predicated region
        $region41: #{tpu_custom_call.1} parent=35 // pred_check
          %p326 = pneg %p162
        $region42: #{tpu_custom_call.1} parent=35 // pred_check_branch
          %328 = sbr.rel (%p326) target = $region44
        $region43: #{tpu_custom_call.1} parent=35 // pred_region
          %s329 = ssub.s32 %s24, 1
          %p330 = scmp.gt.s32.totalorder %s329, 0
          %s331 = scalar_select %p330, %s329, 0
          %p332 = scmp.lt.s32.totalorder %s331, 1
          %s333 = scalar_select %p332, %s331, 1
          %p334 = scmp.lt.s32.totalorder %s333, 1
          %s335 = scalar_select %p334, %s333, 1
          %s336 = scalar_lea.vmem %s4, %s335
          %s337 = ssub.s32 %s24, 1
          %p338 = scmp.gt.s32.totalorder %s337, 0
          %s339 = scalar_select %p338, %s337, 0
          %p340 = scmp.lt.s32.totalorder %s339, 1
          %s341 = scalar_select %p340, %s339, 1
        $region44: #{tpu_custom_call.1} parent=35 // pred_fallthru
          _
      $region36: #{tpu_custom_call.1} parent=5 // pred_fallthru
        _
      %p342 = scmp.le.s32.totalorder 1, %s16
      %p343 = scmp.lt.s32.totalorder %s16, 5
      %p344 = pnand %p342, %p343
      %p345 = pneg %p344
      // Predicated region
      $region45: #{tpu_custom_call.1} parent=5 // pred_check
        _
      $region46: #{tpu_custom_call.1} parent=5 // pred_check_branch
        %347 = sbr.rel (%p344) target = $region48
      $region47: #{tpu_custom_call.1} parent=5 // pred_region
        %s348 = ssub.s32 %s16, 1
        // Predicated region
        $region49: #{tpu_custom_call.1} parent=47 // pred_check
          %p349 = pneg %p54
        $region50: #{tpu_custom_call.1} parent=47 // pred_check_branch
          %351 = sbr.rel (%p349) target = $region52
        $region51: #{tpu_custom_call.1} parent=47 // pred_region
          %352 = dma.done [#allocation4], 64
        $region52: #{tpu_custom_call.1} parent=47 // pred_fallthru
          _
        // Predicated region
        $region53: #{tpu_custom_call.1} parent=47 // pred_check
          %p353 = pneg %p75
        $region54: #{tpu_custom_call.1} parent=47 // pred_check_branch
          %355 = sbr.rel (%p353) target = $region56
        $region55: #{tpu_custom_call.1} parent=47 // pred_region
          %356 = dma.done [#allocation7], 1024
        $region56: #{tpu_custom_call.1} parent=47 // pred_fallthru
          _
        %s357 = sand.u32 %s21, 1
        %s358 = scalar_lea.sflag [#allocation4], %s357
        %s359 = sand.u32 %s119, 1
        %s360 = smul.addr %s359, 64
        %s361 = scalar_lea.vmem [#allocation8], %s360
        // Predicated region
        $region57: #{tpu_custom_call.1} parent=47 // pred_check
          %p362 = pneg %p132
        $region58: #{tpu_custom_call.1} parent=47 // pred_check_branch
          %364 = sbr.rel (%p362) target = $region60
        $region59: #{tpu_custom_call.1} parent=47 // pred_region
          %365 = dma.done %s358, 1024
        $region60: #{tpu_custom_call.1} parent=47 // pred_fallthru
          _
        // Predicated region
        $region61: #{tpu_custom_call.1} parent=47 // pred_check
          %p366 = pneg %p189
        $region62: #{tpu_custom_call.1} parent=47 // pred_check_branch
          %368 = sbr.rel (%p366) target = $region64
        $region63: #{tpu_custom_call.1} parent=47 // pred_region
          %369 = dma.done [#allocation7], 1024
        $region64: #{tpu_custom_call.1} parent=47 // pred_fallthru
          _
        %p370 = pneg %p54
        %p371 = pneg %p51
        %p372 = pneg %p75
        %p373 = pneg %p72
        %p374 = pneg %p96
        %p375 = pneg %p93
        %s376 = sand.u32 %s21, 1
        %s377 = scalar_lea.sflag [#allocation4], %s376
        %s378 = sand.u32 %s119, 1
        %s379 = smul.addr %s378, 64
        %s380 = scalar_lea.vmem [#allocation8], %s379
        %p381 = pneg %p132
        %p382 = pneg %p129
        %s383 = ssub.s32 %s26, 1
        %p384 = scmp.gt.s32.totalorder %s383, 0
        %s385 = scalar_select %p384, %s383, 0
        %p386 = scmp.lt.s32.totalorder %s385, 1
        %s387 = scalar_select %p386, %s385, 1
        %p388 = scmp.lt.s32.totalorder %s387, 1
        %s389 = scalar_select %p388, %s387, 1
        %s390 = scalar_lea.vmem %s4, %s389
        %p391 = pneg %p168
        %p392 = pneg %p165
        %p393 = pneg %p189
        %p394 = pneg %p186
        %p395 = pneg %p210
        %p396 = pneg %p207
        %p397 = pneg %p236
        %p398 = pneg %p233
        %s399 = ssub.s32 %s26, 1
        %p400 = scmp.gt.s32.totalorder %s399, 0
        %s401 = scalar_select %p400, %s399, 0
        %p402 = scmp.lt.s32.totalorder %s401, 1
        %s403 = scalar_select %p402, %s401, 1
        %s404 = ssub.s32 %s26, 1
        %p405 = scmp.gt.s32.totalorder %s404, 0
        %s406 = scalar_select %p405, %s404, 0
        %p407 = scmp.lt.s32.totalorder %s406, 1
        %s408 = scalar_select %p407, %s406, 1
        %p409 = scmp.lt.s32.totalorder %s408, 1
        %s410 = scalar_select %p409, %s408, 1
        %s411 = scalar_lea.vmem %s4, %s410
        %s412 = ssub.s32 %s26, 1
        %p413 = scmp.gt.s32.totalorder %s412, 0
        %s414 = scalar_select %p413, %s412, 0
        %p415 = scmp.lt.s32.totalorder %s414, 1
        %s416 = scalar_select %p415, %s414, 1
        %p418 = scmp.eq.s32.totalorder %s26, 0
        // Predicated region
        $region65: #{tpu_custom_call.1} parent=47 // pred_check
          %p419 = pneg %p418
        $region66: #{tpu_custom_call.1} parent=47 // pred_check_branch
          %421 = sbr.rel (%p419) target = $region68
        $region67: #{tpu_custom_call.1} parent=47 // pred_region
          %v422 = vld [vmem:[#allocation3] sm:$0xf]
          %v423 = vld [vmem:[#allocation6] sm:$0xf]
          %v424 = vld [vmem:[#allocation6 + $0x4] sm:$0xf]
          %v425 = vld [vmem:[#allocation6 + $0x8] sm:$0xf]
          %v426 = vld [vmem:[#allocation6 + $0xc] sm:$0xf]
          %v427 = vld [vmem:[#allocation6 + $0x10] sm:$0xf]
          %v428 = vld [vmem:[#allocation6 + $0x14] sm:$0xf]
          %v429 = vld [vmem:[#allocation6 + $0x18] sm:$0xf]
          %v430 = vld [vmem:[#allocation6 + $0x1c] sm:$0xf]
          %v431 = vld [vmem:[#allocation6 + $0x20] sm:$0xf]
          %v432 = vld [vmem:[#allocation6 + $0x24] sm:$0xf]
          %v433 = vld [vmem:[#allocation6 + $0x28] sm:$0xf]
          %v434 = vld [vmem:[#allocation6 + $0x2c] sm:$0xf]
          %v435 = vld [vmem:[#allocation6 + $0x30] sm:$0xf]
          %v436 = vld [vmem:[#allocation6 + $0x34] sm:$0xf]
          %v437 = vld [vmem:[#allocation6 + $0x38] sm:$0xf]
          %v438 = vld [vmem:[#allocation6 + $0x3c] sm:$0xf]
          %v439 = vld [vmem:[%s2] sm:$0x1]
          %v441 = vlaneseq
          %v442 = vshrl.u32 %v441, 7
          %v443 = vsub.s32 0, %v442
          %v444 = vrot.slane %v439, %v443
          %v462 = vunpack.c.l.b16 %v423
          %v463 = vunpack.c.l.b16 %v424
          %v464 = vunpack.c.l.b16 %v425
          %v465 = vunpack.c.l.b16 %v426
          %v466 = vunpack.c.l.b16 %v427
          %v467 = vunpack.c.l.b16 %v428
          %v468 = vunpack.c.l.b16 %v429
          %v469 = vunpack.c.l.b16 %v430
          %v470 = vunpack.c.l.b16 %v431
          %v471 = vunpack.c.l.b16 %v432
          %v472 = vunpack.c.l.b16 %v433
          %v473 = vunpack.c.l.b16 %v434
          %v474 = vunpack.c.l.b16 %v435
          %v475 = vunpack.c.l.b16 %v436
          %v476 = vunpack.c.l.b16 %v437
          %v477 = vunpack.c.l.b16 %v438
          %v478 = vpack.c.b16 %v463, %v462
          %v479 = vpack.c.b16 %v465, %v464
          %v480 = vpack.c.b16 %v467, %v466
          %v481 = vpack.c.b16 %v469, %v468
          %v482 = vpack.c.b16 %v471, %v470
          %v483 = vpack.c.b16 %v473, %v472
          %v484 = vpack.c.b16 %v475, %v474
          %v485 = vpack.c.b16 %v477, %v476
          %494 = vmatprep.subr.bf16.mxu0 0
          %495 = vmatpush1.bf16.msra.mxu0 %v485
          %496 = vmatprep.subr.bf16.mxu0 0
          %497 = vmatpush1.bf16.msra.mxu0 %v484
          %498 = vmatprep.subr.bf16.mxu0 0
          %499 = vmatpush1.bf16.msra.mxu0 %v483
          %500 = vmatprep.subr.bf16.mxu0 0
          %501 = vmatpush1.bf16.msra.mxu0 %v482
          %502 = vmatprep.subr.bf16.mxu0 0
          %503 = vmatpush1.bf16.msra.mxu0 %v481
          %504 = vmatprep.subr.bf16.mxu0 0
          %505 = vmatpush1.bf16.msra.mxu0 %v480
          %506 = vmatprep.subr.bf16.mxu0 0
          %507 = vmatpush1.bf16.msra.mxu0 %v479
          %508 = vmatprep.subr.bf16.mxu0 0
          %509 = vmatpush1.bf16.msra.mxu0 %v478
          %510 = vmatprep.subr.bf16.mxu0 0
          %511 = vmatpush2.bf16.msra.mxu0 0
          %512 = vmatprep.subr.bf16.mxu0 0
          %513 = vmatpush2.bf16.msra.mxu0 0
          %514 = vmatprep.subr.bf16.mxu0 0
          %515 = vmatpush2.bf16.msra.mxu0 0
          %516 = vmatprep.subr.bf16.mxu0 0
          %517 = vmatpush2.bf16.msra.mxu0 0
          %518 = vmatprep.subr.bf16.mxu0 0
          %519 = vmatpush2.bf16.msra.mxu0 0
          %520 = vmatprep.subr.bf16.mxu0 0
          %521 = vmatpush2.bf16.msra.mxu0 0
          %522 = vmatprep.subr.bf16.mxu0 0
          %523 = vmatpush2.bf16.msra.mxu0 0
          %524 = vmatprep.subr.bf16.mxu0 0
          %525 = vmatpush2.bf16.msra.mxu0 0
          %526 = vmatprep.mubr.bf16.mxu0 0
          %527 = vmatmul.mubr.bf16.gmra.mxu0 %v422
          %v528 = vpop.f32.mrf.mxu0
          %v529 = vadd.f32 %v444, %v528
          %v530 = vpop.f32.mrf.mxu0
          %v531 = vpop.f32.mrf.mxu0
          %v532 = vpop.f32.mrf.mxu0
          %533 = vdwg.mxu0
          %534 = vst [vmem:[#allocation2] sm:$0xff] %v529
        $region68: #{tpu_custom_call.1} parent=47 // pred_fallthru
          _
        %p535 = scmp.gt.s32.totalorder %s26, 0
        %p536 = scmp.lt.s32.totalorder %s26, 3
        %p537 = pnand %p535, %p536
        %p538 = pneg %p537
        // Predicated region
        $region69: #{tpu_custom_call.1} parent=47 // pred_check
          _
        $region70: #{tpu_custom_call.1} parent=47 // pred_check_branch
          %540 = sbr.rel (%p537) target = $region72
        $region71: #{tpu_custom_call.1} parent=47 // pred_region
          %v541 = vld [vmem:[#allocation2] sm:$0xff]
          %v542 = vpack.c.bf16 %v541, %v541
          %v543 = vld [vmem:[%s361] sm:$0xf]
          %v544 = vld [vmem:[%s361 + $0x4] sm:$0xf]
          %v545 = vld [vmem:[%s361 + $0x8] sm:$0xf]
          %v546 = vld [vmem:[%s361 + $0xc] sm:$0xf]
          %v547 = vld [vmem:[%s361 + $0x10] sm:$0xf]
          %v548 = vld [vmem:[%s361 + $0x14] sm:$0xf]
          %v549 = vld [vmem:[%s361 + $0x18] sm:$0xf]
          %v550 = vld [vmem:[%s361 + $0x1c] sm:$0xf]
          %v551 = vld [vmem:[%s361 + $0x20] sm:$0xf]
          %v552 = vld [vmem:[%s361 + $0x24] sm:$0xf]
          %v553 = vld [vmem:[%s361 + $0x28] sm:$0xf]
          %v554 = vld [vmem:[%s361 + $0x2c] sm:$0xf]
          %v555 = vld [vmem:[%s361 + $0x30] sm:$0xf]
          %v556 = vld [vmem:[%s361 + $0x34] sm:$0xf]
          %v557 = vld [vmem:[%s361 + $0x38] sm:$0xf]
          %v558 = vld [vmem:[%s361 + $0x3c] sm:$0xf]
          %v559 = vld [vmem:[%s411] sm:$0x1]
          %v561 = vlaneseq
          %v562 = vshrl.u32 %v561, 7
          %v563 = vsub.s32 0, %v562
          %v564 = vrot.slane %v559, %v563
          %v582 = vunpack.c.l.b16 %v543
          %v583 = vunpack.c.l.b16 %v544
          %v584 = vunpack.c.l.b16 %v545
          %v585 = vunpack.c.l.b16 %v546
          %v586 = vunpack.c.l.b16 %v547
          %v587 = vunpack.c.l.b16 %v548
          %v588 = vunpack.c.l.b16 %v549
          %v589 = vunpack.c.l.b16 %v550
          %v590 = vunpack.c.l.b16 %v551
          %v591 = vunpack.c.l.b16 %v552
          %v592 = vunpack.c.l.b16 %v553
          %v593 = vunpack.c.l.b16 %v554
          %v594 = vunpack.c.l.b16 %v555
          %v595 = vunpack.c.l.b16 %v556
          %v596 = vunpack.c.l.b16 %v557
          %v597 = vunpack.c.l.b16 %v558
          %v598 = vpack.c.b16 %v583, %v582
          %v599 = vpack.c.b16 %v585, %v584
          %v600 = vpack.c.b16 %v587, %v586
          %v601 = vpack.c.b16 %v589, %v588
          %v602 = vpack.c.b16 %v591, %v590
          %v603 = vpack.c.b16 %v593, %v592
          %v604 = vpack.c.b16 %v595, %v594
          %v605 = vpack.c.b16 %v597, %v596
          %614 = vmatprep.subr.bf16.mxu0 0
          %615 = vmatpush1.bf16.msra.mxu0 %v605
          %616 = vmatprep.subr.bf16.mxu0 0
          %617 = vmatpush1.bf16.msra.mxu0 %v604
          %618 = vmatprep.subr.bf16.mxu0 0
          %619 = vmatpush1.bf16.msra.mxu0 %v603
          %620 = vmatprep.subr.bf16.mxu0 0
          %621 = vmatpush1.bf16.msra.mxu0 %v602
          %622 = vmatprep.subr.bf16.mxu0 0
          %623 = vmatpush1.bf16.msra.mxu0 %v601
          %624 = vmatprep.subr.bf16.mxu0 0
          %625 = vmatpush1.bf16.msra.mxu0 %v600
          %626 = vmatprep.subr.bf16.mxu0 0
          %627 = vmatpush1.bf16.msra.mxu0 %v599
          %628 = vmatprep.subr.bf16.mxu0 0
          %629 = vmatpush1.bf16.msra.mxu0 %v598
          %630 = vmatprep.subr.bf16.mxu0 0
          %631 = vmatpush2.bf16.msra.mxu0 0
          %632 = vmatprep.subr.bf16.mxu0 0
          %633 = vmatpush2.bf16.msra.mxu0 0
          %634 = vmatprep.subr.bf16.mxu0 0
          %635 = vmatpush2.bf16.msra.mxu0 0
          %636 = vmatprep.subr.bf16.mxu0 0
          %637 = vmatpush2.bf16.msra.mxu0 0
          %638 = vmatprep.subr.bf16.mxu0 0
          %639 = vmatpush2.bf16.msra.mxu0 0
          %640 = vmatprep.subr.bf16.mxu0 0
          %641 = vmatpush2.bf16.msra.mxu0 0
          %642 = vmatprep.subr.bf16.mxu0 0
          %643 = vmatpush2.bf16.msra.mxu0 0
          %644 = vmatprep.subr.bf16.mxu0 0
          %645 = vmatpush2.bf16.msra.mxu0 0
          %646 = vmatprep.mubr.bf16.mxu0 0
          %647 = vmatmul.mubr.bf16.gmra.mxu0 %v542
          %v648 = vpop.f32.mrf.mxu0
          %v649 = vadd.f32 %v564, %v648
          %v650 = vpop.f32.mrf.mxu0
          %v651 = vpop.f32.mrf.mxu0
          %v652 = vpop.f32.mrf.mxu0
          %653 = vdwg.mxu0
          %v654 = vmax.f32 %v649, 0.0
          %655 = vst [vmem:[#allocation2] sm:$0xff] %v654
        $region72: #{tpu_custom_call.1} parent=47 // pred_fallthru
          _
        %p656 = scmp.eq.s32.totalorder %s26, 3
        // Predicated region
        $region73: #{tpu_custom_call.1} parent=47 // pred_check
          %p657 = pneg %p656
        $region74: #{tpu_custom_call.1} parent=47 // pred_check_branch
          %659 = sbr.rel (%p657) target = $region76
        $region75: #{tpu_custom_call.1} parent=47 // pred_region
          %v660 = vld [vmem:[#allocation2] sm:$0xff]
          %v661 = vpack.c.bf16 %v660, %v660
          %v662 = vld [vmem:[#allocation9] sm:$0xf]
          %v663 = vld [vmem:[#allocation9 + $0x4] sm:$0xf]
          %v664 = vld [vmem:[#allocation9 + $0x8] sm:$0xf]
          %v665 = vld [vmem:[#allocation9 + $0xc] sm:$0xf]
          %v666 = vld [vmem:[#allocation9 + $0x10] sm:$0xf]
          %v667 = vld [vmem:[#allocation9 + $0x14] sm:$0xf]
          %v668 = vld [vmem:[#allocation9 + $0x18] sm:$0xf]
          %v669 = vld [vmem:[#allocation9 + $0x1c] sm:$0xf]
          %v670 = vld [vmem:[#allocation9 + $0x20] sm:$0xf]
          %v671 = vld [vmem:[#allocation9 + $0x24] sm:$0xf]
          %v672 = vld [vmem:[#allocation9 + $0x28] sm:$0xf]
          %v673 = vld [vmem:[#allocation9 + $0x2c] sm:$0xf]
          %v674 = vld [vmem:[#allocation9 + $0x30] sm:$0xf]
          %v675 = vld [vmem:[#allocation9 + $0x34] sm:$0xf]
          %v676 = vld [vmem:[#allocation9 + $0x38] sm:$0xf]
          %v677 = vld [vmem:[#allocation9 + $0x3c] sm:$0xf]
          %v678 = vld [vmem:[%s6] sm:$0x1]
          %v680 = vlaneseq
          %v681 = vshrl.u32 %v680, 7
          %v682 = vsub.s32 0, %v681
          %v683 = vrot.slane %v678, %v682
          %v701 = vunpack.c.l.b16 %v662
          %v702 = vunpack.c.l.b16 %v663
          %v703 = vunpack.c.l.b16 %v664
          %v704 = vunpack.c.l.b16 %v665
          %v705 = vunpack.c.l.b16 %v666
          %v706 = vunpack.c.l.b16 %v667
          %v707 = vunpack.c.l.b16 %v668
          %v708 = vunpack.c.l.b16 %v669
          %v709 = vunpack.c.l.b16 %v670
          %v710 = vunpack.c.l.b16 %v671
          %v711 = vunpack.c.l.b16 %v672
          %v712 = vunpack.c.l.b16 %v673
          %v713 = vunpack.c.l.b16 %v674
          %v714 = vunpack.c.l.b16 %v675
          %v715 = vunpack.c.l.b16 %v676
          %v716 = vunpack.c.l.b16 %v677
          %v717 = vpack.c.b16 %v702, %v701
          %v718 = vpack.c.b16 %v704, %v703
          %v719 = vpack.c.b16 %v706, %v705
          %v720 = vpack.c.b16 %v708, %v707
          %v721 = vpack.c.b16 %v710, %v709
          %v722 = vpack.c.b16 %v712, %v711
          %v723 = vpack.c.b16 %v714, %v713
          %v724 = vpack.c.b16 %v716, %v715
          %733 = vmatprep.subr.bf16.mxu0 0
          %734 = vmatpush1.bf16.msra.mxu0 %v724
          %735 = vmatprep.subr.bf16.mxu0 0
          %736 = vmatpush1.bf16.msra.mxu0 %v723
          %737 = vmatprep.subr.bf16.mxu0 0
          %738 = vmatpush1.bf16.msra.mxu0 %v722
          %739 = vmatprep.subr.bf16.mxu0 0
          %740 = vmatpush1.bf16.msra.mxu0 %v721
          %741 = vmatprep.subr.bf16.mxu0 0
          %742 = vmatpush1.bf16.msra.mxu0 %v720
          %743 = vmatprep.subr.bf16.mxu0 0
          %744 = vmatpush1.bf16.msra.mxu0 %v719
          %745 = vmatprep.subr.bf16.mxu0 0
          %746 = vmatpush1.bf16.msra.mxu0 %v718
          %747 = vmatprep.subr.bf16.mxu0 0
          %748 = vmatpush1.bf16.msra.mxu0 %v717
          %749 = vmatprep.subr.bf16.mxu0 0
          %750 = vmatpush2.bf16.msra.mxu0 0
          %751 = vmatprep.subr.bf16.mxu0 0
          %752 = vmatpush2.bf16.msra.mxu0 0
          %753 = vmatprep.subr.bf16.mxu0 0
          %754 = vmatpush2.bf16.msra.mxu0 0
          %755 = vmatprep.subr.bf16.mxu0 0
          %756 = vmatpush2.bf16.msra.mxu0 0
          %757 = vmatprep.subr.bf16.mxu0 0
          %758 = vmatpush2.bf16.msra.mxu0 0
          %759 = vmatprep.subr.bf16.mxu0 0
          %760 = vmatpush2.bf16.msra.mxu0 0
          %761 = vmatprep.subr.bf16.mxu0 0
          %762 = vmatpush2.bf16.msra.mxu0 0
          %763 = vmatprep.subr.bf16.mxu0 0
          %764 = vmatpush2.bf16.msra.mxu0 0
          %765 = vmatprep.mubr.bf16.mxu0 0
          %766 = vmatmul.mubr.bf16.gmra.mxu0 %v661
          %v767 = vpop.f32.mrf.mxu0
          %v768 = vadd.f32 %v683, %v767
          %v769 = vpop.f32.mrf.mxu0
          %v770 = vpop.f32.mrf.mxu0
          %v771 = vpop.f32.mrf.mxu0
          %772 = vdwg.mxu0
          %773 = vst [vmem:[#allocation10] sm:$0xff] %v768
        $region76: #{tpu_custom_call.1} parent=47 // pred_fallthru
          _
        // Predicated region
        $region77: #{tpu_custom_call.1} parent=47 // pred_check
          %p774 = pneg %p233
        $region78: #{tpu_custom_call.1} parent=47 // pred_check_branch
          %776 = sbr.rel (%p774) target = $region80
        $region79: #{tpu_custom_call.1} parent=47 // pred_region
          %s778 = ssub.s32 128, 128
          %779 = vsyncadd [#allocation5], %s778
          %s780 = smul.addr %s25, 128
          %s781 = scalar_lea.hbm %s7, %s780
          %s783 = sshll.u32 [#allocation10], 4
          %s784 = int_to_ptr.vmem [resolvable:$true] %s783
          %786 = dma.vmem_to_hbm [thread:$0]  %s784, 128, %s781, [#allocation5]
        $region80: #{tpu_custom_call.1} parent=47 // pred_fallthru
          _
        // Predicated region
        $region81: #{tpu_custom_call.1} parent=47 // pred_check
          %p787 = pneg %p233
        $region82: #{tpu_custom_call.1} parent=47 // pred_check_branch
          %789 = sbr.rel (%p787) target = $region84
        $region83: #{tpu_custom_call.1} parent=47 // pred_region
          %790 = dma.done [#allocation5], 128
        $region84: #{tpu_custom_call.1} parent=47 // pred_fallthru
          _
      $region48: #{tpu_custom_call.1} parent=5 // pred_fallthru
        _
      %p791 = scmp.le.s32.totalorder 2, %s16
      // Predicated region
      $region85: #{tpu_custom_call.1} parent=5 // pred_check
        %p792 = pneg %p791
      $region86: #{tpu_custom_call.1} parent=5 // pred_check_branch
        %794 = sbr.rel (%p792) target = $region88
      $region87: #{tpu_custom_call.1} parent=5 // pred_region
        %s795 = ssub.s32 %s16, 2
      $region88: #{tpu_custom_call.1} parent=5 // pred_fallthru
        _
    $region6: #{tpu_custom_call.1} parent=1 // loop_footer
      %s20 = sadd.s32 1, %s16
    $region7: #{tpu_custom_call.1} parent=1 // loop_footer_branch
      %15 = sbr.rel target = $region3
    $region8: #{tpu_custom_call.1} parent=1 // loop_exit
      _
    %796 = vsyncpa [#allocation4], 1
    %s797 = scalar_lea.sflag [#allocation4], 1
    %798 = vsyncpa %s797, 1
    %799 = vsyncpa [#allocation7], 1
    %800 = vsyncpa [#allocation5], 1
    %s801 = scalar_lea.sflag [#allocation5], 1
    %802 = vsyncpa %s801, 1

</llo_original>
